<compile_context>
chip_gen: v5e
topology: v5e:2x2
jax: 0.10.0
libtpu: 0.0.40
codegen_flags: <defaults>
</compile_context>

<pallas_src>
import functools

import jax
import jax.numpy as jnp
from jax.experimental import pallas as pl
from jax.experimental.pallas import tpu as pltpu


def _round_up(x: int, m: int) -> int:
    return ((x + m - 1) // m) * m


def _temp_scaled_kernel(x_ref, w_ref, b_ref, o_ref, *, apply_softmax: bool):
    # Base model: linear head on the MXU (bf16 inputs, f32 accumulate).
    logits = jnp.dot(x_ref[...], w_ref[...], preferred_element_type=jnp.float32)
    logits = logits + b_ref[...]            # (TB, Cp) + (1, Cp) broadcast
    # 1/T was pre-folded into W and b by the wrapper, so the kernel never sees
    # the temperature scalar.  Padded class columns carry bias = -1e30, so
    # exp(...) == 0 under softmax; the wrapper slices them away.
    if apply_softmax:
        m = jnp.max(logits, axis=1, keepdims=True)
        e = jnp.exp(logits - m)
        denom = jnp.sum(e, axis=1, keepdims=True)
        # Exact division: the kernel is HBM-bound so the extra cycles are
        # hidden, and each output row sums to exactly 1.
        o_ref[...] = (e / denom).astype(o_ref.dtype)
    else:
        o_ref[...] = logits.astype(o_ref.dtype)


@functools.partial(
    jax.jit,
    static_argnames=("apply_scale", "apply_softmax", "block_b", "out_dtype"),
)
def temp_scaled_forward(x, w, b, temperature, *,
                        apply_scale=False, apply_softmax=False,
                        block_b=512, out_dtype=jnp.float32):
    """logits = x @ w + b ; optionally / T ; optionally softmax over axis 1.

    x: (B, H) f32, w: (H, C) f32, b: (1, C) f32, temperature: (1,) f32.
    The whole forward (pad -> pallas_call -> slice) runs under one jit so the
    wrapper pad/slice fuse with producers/consumers instead of costing extra
    HBM copies.
    """
    B, H = x.shape
    Hw, C = w.shape
    assert H == Hw and b.shape == (1, C)

    w = w.astype(jnp.float32)
    b = b.astype(jnp.float32)

    # Fold 1/T into the (tiny) weights/bias once, outside the kernel.
    if apply_scale:
        inv_t = 1.0 / temperature[0]
        w = w * inv_t
        b = b * inv_t

    # ---- lane-dense class axis: pad C up to a multiple of 128 ----
    # (If H/C grow into the compute-bound regime, pad to 256 on v6e/v7x to
    #  fill the 256-wide MXU; 128 already fills the v5e MXU.)
    C_pad = _round_up(C, 128)
    if C_pad != C:
        w = jnp.pad(w, ((0, 0), (0, C_pad - C)))
        # Padded classes must vanish under softmax -> very negative bias.
        b = jnp.pad(b, ((0, 0), (0, C_pad - C)), constant_values=-1e30)

    # ---- batch tiling ----
    # TB: multiple of 8, as large as block_b allows (big tiles amortize the
    # per-step pipeline overhead), but keep grid length >= 2 so the "parallel"
    # batch axis shards across both TensorCores on v7x.
    TB = min(block_b, _round_up(B, 8))
    TB = max(8, _round_up(TB, 8))
    if _round_up(B, TB) // TB < 2 and TB > 8:
        TB = max(8, _round_up(TB // 2, 8))
    B_pad = _round_up(B, TB)
    if B_pad != B:
        x = jnp.pad(x, ((0, B_pad - B), (0, 0)))

    # ---- halve the dominant HBM streams: bf16 x / W, f32 accumulate ----
    x = x.astype(jnp.bfloat16)
    w = w.astype(jnp.bfloat16)

    kernel = functools.partial(_temp_scaled_kernel, apply_softmax=apply_softmax)
    grid = (B_pad // TB,)

    out_itemsize = jnp.dtype(out_dtype).itemsize
    bytes_accessed = (x.size * x.dtype.itemsize
                      + w.size * w.dtype.itemsize
                      + b.size * b.dtype.itemsize
                      + B_pad * C_pad * out_itemsize)
    cost = pl.CostEstimate(
        flops=2 * B_pad * H * C_pad,
        transcendentals=(B_pad * C_pad) if apply_softmax else 0,
        bytes_accessed=bytes_accessed,
    )

    # VMEM budget: double-buffered x/out tiles + resident W/bias, with
    # headroom.  Kept under v7x's 64 MiB physical VMEM; on v5e/v6e this can be
    # raised toward 128 MiB if TB / H grow.
    tile_bytes = (2 * TB * H * 2              # x tiles (bf16, 2 buffers)
                  + 2 * H * C_pad * 2         # W (bf16, constant index, 2 bufs)
                  + 2 * C_pad * 4             # bias
                  + 2 * TB * C_pad * out_itemsize)
    vmem_limit = int(min(max(2 * tile_bytes + (2 << 20), 16 << 20), 48 << 20))

    out = pl.pallas_call(
        kernel,
        out_shape=jax.ShapeDtypeStruct((B_pad, C_pad), out_dtype),
        grid=grid,
        in_specs=[
            # x: tiled over batch, auto double-buffered HBM<->VMEM.
            pl.BlockSpec((TB, H), lambda i: (i, 0)),
            # W, bias: constant index_map -> DMA'd once, stay resident in VMEM.
            # TODO(synk): for production-size W on v7x (64 MiB VMEM), single-
            # buffer these or add an H grid axis with a VMEM accumulator.
            pl.BlockSpec((H, C_pad), lambda i: (0, 0)),
            pl.BlockSpec((1, C_pad), lambda i: (0, 0)),
        ],
        out_specs=pl.BlockSpec((TB, C_pad), lambda i: (i, 0)),
        compiler_params=pltpu.CompilerParams(
            dimension_semantics=("parallel",),
            vmem_limit_bytes=vmem_limit,
        ),
        cost_estimate=cost,
    )(x, w, b)

    # Slice away batch/class padding (fuses into the consumer under jit).
    return out[:B, :C]


if __name__ == "__main__":
    key = jax.random.PRNGKey(0)
    kx, kw, kb = jax.random.split(key, 3)

    B, H, C = 256, 128, 16        # batch, hidden, num_classes
    x = jax.random.normal(kx, (B, H), dtype=jnp.float32)
    w = jax.random.normal(kw, (H, C), dtype=jnp.float32) * 0.1
    b = jax.random.normal(kb, (1, C), dtype=jnp.float32) * 0.01
    temperature = jnp.array([1.5], dtype=jnp.float32)

    # bf16-matched reference inputs (the kernel streams x / W as bf16).
    xb = x.astype(jnp.bfloat16).astype(jnp.float32)

    # Path 1: apply_scale=True, apply_softmax=True -> calibrated probabilities.
    out = temp_scaled_forward(x, w, b, temperature,
                              apply_scale=True, apply_softmax=True)
    out = jax.block_until_ready(out)
    assert out.shape == (B, C)
    inv_t = 1.0 / temperature[0]
    wb_s = (w * inv_t).astype(jnp.bfloat16).astype(jnp.float32)
    ref = jax.nn.softmax(xb @ wb_s + b * inv_t, axis=1)
    assert jnp.allclose(out, ref, atol=2e-3, rtol=2e-3), "softmax path mismatch"
    ref_f32 = jax.nn.softmax((x @ w + b) / temperature[0], axis=1)
    assert jnp.allclose(out, ref_f32, atol=3e-2, rtol=3e-2), "softmax f32 sanity"
    assert jnp.allclose(jnp.sum(out, axis=1), 1.0, atol=1e-5), "rows must sum to 1"

    # Path 2: PyTorch defaults (apply_scale=False, apply_softmax=False) -> raw logits.
    logits = temp_scaled_forward(x, w, b, temperature)
    logits = jax.block_until_ready(logits)
    wb = w.astype(jnp.bfloat16).astype(jnp.float32)
    ref_logits = xb @ wb + b
    assert jnp.allclose(logits, ref_logits, atol=2e-3, rtol=2e-3), "logits path mismatch"

    # Path 3: bf16 output (halves the class-padded writeback).
    out_bf16 = temp_scaled_forward(x, w, b, temperature,
                                   apply_scale=True, apply_softmax=True,
                                   out_dtype=jnp.bfloat16)
    out_bf16 = jax.block_until_ready(out_bf16)
    assert out_bf16.dtype == jnp.bfloat16
    assert jnp.allclose(out_bf16.astype(jnp.float32), ref, atol=1e-2, rtol=1e-2), \
        "bf16 output path mismatch"

    print("KERNEL_OK")
</pallas_src>

<mosaic_0001>
module attributes {stable_mosaic.version = 11 : i64} {
  func.func @_temp_scaled_kernel(%arg0: i32, %arg1: memref<128x128xbf16, #tpu.memory_space<vmem>>, %arg2: memref<128x128xbf16, #tpu.memory_space<vmem>>, %arg3: memref<1x128xf32, #tpu.memory_space<vmem>>, %arg4: memref<128x128xf32, #tpu.memory_space<vmem>>) attributes {dimension_semantics = [#tpu.dimension_semantics<parallel>], iteration_bounds = array<i64: 2>, scalar_prefetch = 0 : i64, scratch_operands = 0 : i64, tpu.core_type = #tpu.core_type<tc>, window_params = [{transform_indices = @transform_0, window_bounds = array<i64: 128, 128>}, {pipeline_mode = #tpu.pipeline_mode<synchronous>, transform_indices = @transform_1, window_bounds = array<i64: 128, 128>}, {pipeline_mode = #tpu.pipeline_mode<synchronous>, transform_indices = @transform_2, window_bounds = array<i64: 1, 128>}, {transform_indices = @transform_3, window_bounds = array<i64: 128, 128>}]} {
    %c0 = arith.constant 0 : index
    %c0_0 = arith.constant 0 : index
    %0 = vector.load %arg1[%c0, %c0_0] : memref<128x128xbf16, #tpu.memory_space<vmem>>, vector<128x128xbf16>
    %c0_1 = arith.constant 0 : index
    %c0_2 = arith.constant 0 : index
    %1 = vector.load %arg2[%c0_1, %c0_2] : memref<128x128xbf16, #tpu.memory_space<vmem>>, vector<128x128xbf16>
    %cst = arith.constant dense<0.000000e+00> : vector<128x128xf32>
    %2 = tpu.matmul %0, %1, %cst {dimension_numbers = #tpu.dot_dimension_numbers<[1], [0], [0], [1], [0, 0, 1, 1], [], []>} : vector<128x128xbf16>, vector<128x128xbf16>, vector<128x128xf32> -> vector<128x128xf32>
    %c0_3 = arith.constant 0 : index
    %c0_4 = arith.constant 0 : index
    %3 = vector.load %arg3[%c0_3, %c0_4] : memref<1x128xf32, #tpu.memory_space<vmem>>, vector<1x128xf32>
    %4 = vector.broadcast %3 : vector<1x128xf32> to vector<128x128xf32>
    %5 = arith.addf %2, %4 : vector<128x128xf32>
    %cst_5 = arith.constant dense<0xFF800000> : vector<128xf32>
    %6 = vector.multi_reduction <maximumf>, %5, %cst_5 [1] : vector<128x128xf32> to vector<128xf32>
    %7 = vector.shape_cast %6 : vector<128xf32> to vector<128x1xf32>
    %8 = vector.broadcast %7 : vector<128x1xf32> to vector<128x128xf32>
    %9 = arith.subf %5, %8 : vector<128x128xf32>
    %10 = math.exp %9 : vector<128x128xf32>
    %cst_6 = arith.constant dense<0.000000e+00> : vector<128xf32>
    %11 = vector.multi_reduction <add>, %10, %cst_6 [1] : vector<128x128xf32> to vector<128xf32>
    %12 = vector.shape_cast %11 : vector<128xf32> to vector<128x1xf32>
    %13 = vector.broadcast %12 : vector<128x1xf32> to vector<128x128xf32>
    %14 = arith.divf %10, %13 : vector<128x128xf32>
    %c0_7 = arith.constant 0 : index
    %c0_8 = arith.constant 0 : index
    %15 = vector.load %arg4[%c0_7, %c0_8] : memref<128x128xf32, #tpu.memory_space<vmem>>, vector<128x128xf32>
    tpu.vector_store %arg4[%c0_7, %c0_8], %14 {strides = array<i32>} : memref<128x128xf32, #tpu.memory_space<vmem>>, vector<128x128xf32>,
    return
  }
  func.func @transform_0(%arg0: i32) -> (i32, i32) {
    %c0_i32 = arith.constant 0 : i32
    %c0_i32_0 = arith.constant 0 : i32
    return %arg0, %c0_i32 : i32, i32
  }
  func.func @transform_1(%arg0: i32) -> (i32, i32) {
    %c0_i32 = arith.constant 0 : i32
    %c0_i32_0 = arith.constant 0 : i32
    %c0_i32_1 = arith.constant 0 : i32
    return %c0_i32, %c0_i32_0 : i32, i32
  }
  func.func @transform_2(%arg0: i32) -> (i32, i32) {
    %c0_i32 = arith.constant 0 : i32
    %c0_i32_0 = arith.constant 0 : i32
    %c0_i32_1 = arith.constant 0 : i32
    return %c0_i32, %c0_i32_0 : i32, i32
  }
  func.func @transform_3(%arg0: i32) -> (i32, i32) {
    %c0_i32 = arith.constant 0 : i32
    %c0_i32_0 = arith.constant 0 : i32
    return %arg0, %c0_i32 : i32, i32
  }
}

</mosaic_0001>

<llo_original>
// kernel: temp_scaled_forward.1
$region0: #{temp_scaled_forward.1}
  #allocation0 [shape = 'u32[]', space=smem, size = 0x4, offset = 0x4, fixed_abs, tag = 'smem constant byte address 0x4 - core index']
  #allocation1 [shape = 'u32[72,128]{1,0:T(1,128)}', space=vmem, size = 0x9000, scoped, tag = 'internal scratch']
  %s0 = inlined_call_operand.vmem [shape: bf16[256,128], index: 0, kind: input, shape index: {}]
  %s1 = inlined_call_operand.vmem [shape: bf16[128,128], index: 1, kind: input, shape index: {}]
  %s2 = inlined_call_operand.vmem [shape: f32[1,128], index: 2, kind: input, shape index: {}]
  %s3 = inlined_call_operand.vmem [shape: f32[256,128], index: 3, kind: output, shape index: {}]
  %s4 = sld [smem:[#allocation0]]
  $region45: #{temp_scaled_forward.1} parent=0
    _
  %s6 = ssub.s32 1, %s4
  %s7 = scalar_select 0, %s6, %s4
  loop: start=0, step=1, limit=4
  $region2: #{temp_scaled_forward.1} parent=0 // loop_pre_header
    _
  $region3: #{temp_scaled_forward.1} parent=0 // loop_header
    %s9 = sphi 0, %s13
    %p10 = scmp.ge.s32.totalorder %s9, 4
    %s19 = sphi 0, %s21
    %s22 = sphi 0, %s19
    %s23 = sphi 0, %s22
    %s39 = sphi 0, %s23
    %s43 = sphi 0, %s43
    %s45 = sphi 0, %s43
    %s46 = sphi 0, %s45
    %s60 = sphi 0, %s46
    %s64 = sphi 0, %s64
    %s66 = sphi 0, %s64
    %s67 = sphi 0, %s66
    %s81 = sphi 0, %s67
    %s87 = sphi 0, %s89
    %s90 = sphi 0, %s87
    %s91 = sphi 0, %s90
    %s107 = sphi 0, %s91
  $region4: #{temp_scaled_forward.1} parent=0 // loop_header_branch
    %12 = sbr.rel (%p10) target = $region8
  $region5: #{temp_scaled_forward.1} parent=0 // loop_body
    %s14 = ssub.s32 %s9, 1
    %s15 = ssub.s32 %s9, 2
    %s16 = sadd.s32 %s9, 1
    %s17 = ssub.s32 %s9, %s16
    %p18 = scmp.eq.s32.totalorder %s17, 0
    %s20 = sadd.s32 %s19, 1
    %s21 = scalar_select %p18, %s19, %s20
    %p24 = pneg %p18
    %p25 = scmp.eq.s32.totalorder %s9, 1
    %p26 = por %p24, %p25
    %p27 = scmp.ne.s32.totalorder %s19, %s22
    %p28 = scmp.eq.s32.totalorder %s9, 0
    %p29 = por %p27, %p28
    %p30 = scmp.ne.s32.totalorder %s19, %s22
    %p31 = scmp.eq.s32.totalorder %s14, 1
    %p32 = por %p30, %p31
    %p33 = scmp.ne.s32.totalorder %s22, %s23
    %p34 = scmp.eq.s32.totalorder %s14, 0
    %p35 = por %p33, %p34
    %p36 = scmp.ne.s32.totalorder %s22, %s23
    %p37 = scmp.eq.s32.totalorder %s15, 1
    %p38 = por %p36, %p37
    %p40 = scmp.ne.s32.totalorder %s23, %s39
    %p41 = scmp.eq.s32.totalorder %s15, 0
    %p42 = por %p40, %p41
    %s44 = sadd.s32 %s43, 1
    %p47 = scmp.eq.s32.totalorder %s9, 1
    %p48 = scmp.ne.s32.totalorder %s43, %s45
    %p49 = scmp.eq.s32.totalorder %s9, 0
    %p50 = por %p48, %p49
    %p51 = scmp.ne.s32.totalorder %s43, %s45
    %p52 = scmp.eq.s32.totalorder %s14, 1
    %p53 = por %p51, %p52
    %p54 = scmp.ne.s32.totalorder %s45, %s46
    %p55 = scmp.eq.s32.totalorder %s14, 0
    %p56 = por %p54, %p55
    %p57 = scmp.ne.s32.totalorder %s45, %s46
    %p58 = scmp.eq.s32.totalorder %s15, 1
    %p59 = por %p57, %p58
    %p61 = scmp.ne.s32.totalorder %s46, %s60
    %p62 = scmp.eq.s32.totalorder %s15, 0
    %p63 = por %p61, %p62
    %s65 = sadd.s32 %s64, 1
    %p68 = scmp.eq.s32.totalorder %s9, 1
    %p69 = scmp.ne.s32.totalorder %s64, %s66
    %p70 = scmp.eq.s32.totalorder %s9, 0
    %p71 = por %p69, %p70
    %p72 = scmp.ne.s32.totalorder %s64, %s66
    %p73 = scmp.eq.s32.totalorder %s14, 1
    %p74 = por %p72, %p73
    %p75 = scmp.ne.s32.totalorder %s66, %s67
    %p76 = scmp.eq.s32.totalorder %s14, 0
    %p77 = por %p75, %p76
    %p78 = scmp.ne.s32.totalorder %s66, %s67
    %p79 = scmp.eq.s32.totalorder %s15, 1
    %p80 = por %p78, %p79
    %p82 = scmp.ne.s32.totalorder %s67, %s81
    %p83 = scmp.eq.s32.totalorder %s15, 0
    %p84 = por %p82, %p83
    %s85 = ssub.s32 %s9, %s16
    %p86 = scmp.eq.s32.totalorder %s85, 0
    %s88 = sadd.s32 %s87, 1
    %s89 = scalar_select %p86, %s87, %s88
    %p92 = pneg %p86
    %p93 = scmp.eq.s32.totalorder %s9, 1
    %p94 = por %p92, %p93
    %p95 = scmp.ne.s32.totalorder %s87, %s90
    %p96 = scmp.eq.s32.totalorder %s9, 0
    %p97 = por %p95, %p96
    %p98 = scmp.ne.s32.totalorder %s87, %s90
    %p99 = scmp.eq.s32.totalorder %s14, 1
    %p100 = por %p98, %p99
    %p101 = scmp.ne.s32.totalorder %s90, %s91
    %p102 = scmp.eq.s32.totalorder %s14, 0
    %p103 = por %p101, %p102
    %p104 = scmp.ne.s32.totalorder %s90, %s91
    %p105 = scmp.eq.s32.totalorder %s15, 1
    %p106 = por %p104, %p105
    %p108 = scmp.ne.s32.totalorder %s91, %s107
    %p109 = scmp.eq.s32.totalorder %s15, 0
    %p110 = por %p108, %p109
    %p111 = scmp.le.s32.totalorder 1, %s9
    %p112 = scmp.lt.s32.totalorder %s9, 3
    %p113 = pnand %p111, %p112
    %p114 = pneg %p113
    // Predicated region
    $region9: #{temp_scaled_forward.1} parent=5 // pred_check
      _
    $region10: #{temp_scaled_forward.1} parent=5 // pred_check_branch
      %116 = sbr.rel (%p113) target = $region12
    $region11: #{temp_scaled_forward.1} parent=5 // pred_region
      %s117 = ssub.s32 %s9, 1
      // Predicated region
      $region13: #{temp_scaled_forward.1} parent=11 // pred_check
        %p118 = pneg %p56
      $region14: #{temp_scaled_forward.1} parent=11 // pred_check_branch
        %120 = sbr.rel (%p118) target = $region16
      $region15: #{temp_scaled_forward.1} parent=11 // pred_region
        _
      $region16: #{temp_scaled_forward.1} parent=11 // pred_fallthru
        _
      // Predicated region
      $region17: #{temp_scaled_forward.1} parent=11 // pred_check
        %p121 = pneg %p77
      $region18: #{temp_scaled_forward.1} parent=11 // pred_check_branch
        %123 = sbr.rel (%p121) target = $region20
      $region19: #{temp_scaled_forward.1} parent=11 // pred_region
        _
      $region20: #{temp_scaled_forward.1} parent=11 // pred_fallthru
        _
    $region12: #{temp_scaled_forward.1} parent=5 // pred_fallthru
      _
    %p124 = scmp.lt.s32.totalorder %s9, 2
    // Predicated region
    $region21: #{temp_scaled_forward.1} parent=5 // pred_check
      %p125 = pneg %p124
    $region22: #{temp_scaled_forward.1} parent=5 // pred_check_branch
      %127 = sbr.rel (%p125) target = $region24
    $region23: #{temp_scaled_forward.1} parent=5 // pred_region
      // Predicated region
      $region25: #{temp_scaled_forward.1} parent=23 // pred_check
        %p128 = pneg %p29
      $region26: #{temp_scaled_forward.1} parent=23 // pred_check_branch
        %130 = sbr.rel (%p128) target = $region28
      $region27: #{temp_scaled_forward.1} parent=23 // pred_region
        %s131 = smul.u32 16, %s9
        %p132 = scmp.lt.s32.totalorder %s131, 31
        %s133 = scalar_select %p132, %s131, 31
        %s134 = smul.addr %s133, 4
        %s135 = scalar_lea.vmem %s0, %s134
        %s136 = smul.u32 16, %s9
      $region28: #{temp_scaled_forward.1} parent=23 // pred_fallthru
        _
    $region24: #{temp_scaled_forward.1} parent=5 // pred_fallthru
      _
    %p137 = scmp.le.s32.totalorder 1, %s9
    %p138 = scmp.lt.s32.totalorder %s9, 3
    %p139 = pnand %p137, %p138
    %p140 = pneg %p139
    // Predicated region
    $region29: #{temp_scaled_forward.1} parent=5 // pred_check
      _
    $region30: #{temp_scaled_forward.1} parent=5 // pred_check_branch
      %142 = sbr.rel (%p139) target = $region32
    $region31: #{temp_scaled_forward.1} parent=5 // pred_region
      %s143 = ssub.s32 %s9, 1
      %s144 = smul.u32 16, %s14
      %p145 = scmp.lt.s32.totalorder %s144, 31
      %s146 = scalar_select %p145, %s144, 31
      %s147 = smul.addr %s146, 4
      %s148 = scalar_lea.vmem %s0, %s147
      %p149 = pneg %p35
      %p150 = pneg %p32
      %p151 = pneg %p56
      %p152 = pneg %p53
      %p153 = pneg %p77
      %p154 = pneg %p74
      %p155 = pneg %p103
      %p156 = pneg %p100
      %s157 = smul.u32 16, %s14
      %p158 = scmp.lt.s32.totalorder %s157, 31
      %s159 = scalar_select %p158, %s157, 31
      %s160 = smul.addr %s159, 8
      %s161 = scalar_lea.vmem %s3, %s160
      %s162 = smul.u32 16, %s14
      %p163 = scmp.lt.s32.totalorder %s162, 31
      %s164 = scalar_select %p163, %s162, 31
      %s165 = smul.addr %s164, 4
      %s166 = scalar_lea.vmem %s0, %s165
      %s167 = smul.u32 16, %s14
      %s168 = smul.u32 16, %s14
      %p169 = scmp.lt.s32.totalorder %s168, 31
      %s170 = scalar_select %p169, %s168, 31
      %s171 = smul.addr %s170, 8
      %s172 = scalar_lea.vmem %s3, %s171
      %s173 = smul.u32 16, %s14
      %v174 = vld [vmem:[%s166] sm:$0xf]
      %v175 = vld [vmem:[%s166 + $0x4] sm:$0xf]
      %v176 = vld [vmem:[%s166 + $0x8] sm:$0xf]
      %v177 = vld [vmem:[%s166 + $0xc] sm:$0xf]
      %v178 = vld [vmem:[%s166 + $0x10] sm:$0xf]
      %v179 = vld [vmem:[%s166 + $0x14] sm:$0xf]
      %v180 = vld [vmem:[%s166 + $0x18] sm:$0xf]
      %v181 = vld [vmem:[%s166 + $0x1c] sm:$0xf]
      %v182 = vld [vmem:[%s166 + $0x20] sm:$0xf]
      %v183 = vld [vmem:[%s166 + $0x24] sm:$0xf]
      %v184 = vld [vmem:[%s166 + $0x28] sm:$0xf]
      %v185 = vld [vmem:[%s166 + $0x2c] sm:$0xf]
      %v186 = vld [vmem:[%s166 + $0x30] sm:$0xf]
      %v187 = vld [vmem:[%s166 + $0x34] sm:$0xf]
      %v188 = vld [vmem:[%s166 + $0x38] sm:$0xf]
      %v189 = vld [vmem:[%s166 + $0x3c] sm:$0xf]
      %v190 = vld [vmem:[%s1] sm:$0xf]
      %v191 = vld [vmem:[%s1 + $0x4] sm:$0xf]
      %v192 = vld [vmem:[%s1 + $0x8] sm:$0xf]
      %v193 = vld [vmem:[%s1 + $0xc] sm:$0xf]
      %v194 = vld [vmem:[%s1 + $0x10] sm:$0xf]
      %v195 = vld [vmem:[%s1 + $0x14] sm:$0xf]
      %v196 = vld [vmem:[%s1 + $0x18] sm:$0xf]
      %v197 = vld [vmem:[%s1 + $0x1c] sm:$0xf]
      %v198 = vld [vmem:[%s1 + $0x20] sm:$0xf]
      %v199 = vld [vmem:[%s1 + $0x24] sm:$0xf]
      %v200 = vld [vmem:[%s1 + $0x28] sm:$0xf]
      %v201 = vld [vmem:[%s1 + $0x2c] sm:$0xf]
      %v202 = vld [vmem:[%s1 + $0x30] sm:$0xf]
      %v203 = vld [vmem:[%s1 + $0x34] sm:$0xf]
      %v204 = vld [vmem:[%s1 + $0x38] sm:$0xf]
      %v205 = vld [vmem:[%s1 + $0x3c] sm:$0xf]
      %v206 = vld [vmem:[%s2] sm:$0x1]
      %v208 = vperm.slane %v206, 0
      %v226 = vunpack.c.l.b16 %v174
      %v227 = vunpack.c.l.b16 %v175
      %v228 = vunpack.c.l.b16 %v176
      %v229 = vunpack.c.l.b16 %v177
      %v230 = vunpack.c.l.b16 %v178
      %v231 = vunpack.c.l.b16 %v179
      %v232 = vunpack.c.l.b16 %v180
      %v233 = vunpack.c.l.b16 %v181
      %v234 = vunpack.c.l.b16 %v182
      %v235 = vunpack.c.l.b16 %v183
      %v236 = vunpack.c.l.b16 %v184
      %v237 = vunpack.c.l.b16 %v185
      %v238 = vunpack.c.l.b16 %v186
      %v239 = vunpack.c.l.b16 %v187
      %v240 = vunpack.c.l.b16 %v188
      %v241 = vunpack.c.l.b16 %v189
      %v242 = vpack.c.b16 %v227, %v226
      %v243 = vpack.c.b16 %v229, %v228
      %v244 = vpack.c.b16 %v231, %v230
      %v245 = vpack.c.b16 %v233, %v232
      %v246 = vpack.c.b16 %v235, %v234
      %v247 = vpack.c.b16 %v237, %v236
      %v248 = vpack.c.b16 %v239, %v238
      %v249 = vpack.c.b16 %v241, %v240
      %v274 = vunpack.c.l.b16 %v190
      %v275 = vunpack.c.l.b16 %v191
      %v276 = vunpack.c.l.b16 %v192
      %v277 = vunpack.c.l.b16 %v193
      %v278 = vunpack.c.l.b16 %v194
      %v279 = vunpack.c.l.b16 %v195
      %v280 = vunpack.c.l.b16 %v196
      %v281 = vunpack.c.l.b16 %v197
      %v282 = vunpack.c.l.b16 %v198
      %v283 = vunpack.c.l.b16 %v199
      %v284 = vunpack.c.l.b16 %v200
      %v285 = vunpack.c.l.b16 %v201
      %v286 = vunpack.c.l.b16 %v202
      %v287 = vunpack.c.l.b16 %v203
      %v288 = vunpack.c.l.b16 %v204
      %v289 = vunpack.c.l.b16 %v205
      %v290 = vpack.c.b16 %v275, %v274
      %v291 = vpack.c.b16 %v277, %v276
      %v292 = vpack.c.b16 %v279, %v278
      %v293 = vpack.c.b16 %v281, %v280
      %v294 = vpack.c.b16 %v283, %v282
      %v295 = vpack.c.b16 %v285, %v284
      %v296 = vpack.c.b16 %v287, %v286
      %v297 = vpack.c.b16 %v289, %v288
      %306 = vmatpush.bf16.msra.mxu0 %v297
      %307 = vmatpush.bf16.msra.mxu0 %v296
      %308 = vmatpush.bf16.msra.mxu0 %v295
      %309 = vmatpush.bf16.msra.mxu0 %v294
      %310 = vmatpush.bf16.msra.mxu0 %v293
      %311 = vmatpush.bf16.msra.mxu0 %v292
      %312 = vmatpush.bf16.msra.mxu0 %v291
      %313 = vmatpush.bf16.msra.mxu0 %v290
      %314 = vmatmul.bf16.gmra.mxu0 %v242
      %v315 = vpop.f32.mrf.mxu0
      %v316 = vadd.f32 %v208, %v315
      %v317 = vpop.f32.mrf.mxu0
      %v318 = vadd.f32 %v208, %v317
      %319 = vmatmul.bf16.gmra.mxu0 %v243
      %v320 = vpop.f32.mrf.mxu0
      %v321 = vadd.f32 %v208, %v320
      %v322 = vpop.f32.mrf.mxu0
      %v323 = vadd.f32 %v208, %v322
      %324 = vmatmul.bf16.gmra.mxu0 %v244
      %v325 = vpop.f32.mrf.mxu0
      %v326 = vadd.f32 %v208, %v325
      %v327 = vpop.f32.mrf.mxu0
      %v328 = vadd.f32 %v208, %v327
      %329 = vmatmul.bf16.gmra.mxu0 %v245
      %v330 = vpop.f32.mrf.mxu0
      %v331 = vadd.f32 %v208, %v330
      %v332 = vpop.f32.mrf.mxu0
      %v333 = vadd.f32 %v208, %v332
      %334 = vmatmul.bf16.gmra.mxu0 %v246
      %v335 = vpop.f32.mrf.mxu0
      %v336 = vadd.f32 %v208, %v335
      %v337 = vpop.f32.mrf.mxu0
      %v338 = vadd.f32 %v208, %v337
      %339 = vmatmul.bf16.gmra.mxu0 %v247
      %v340 = vpop.f32.mrf.mxu0
      %v341 = vadd.f32 %v208, %v340
      %v342 = vpop.f32.mrf.mxu0
      %v343 = vadd.f32 %v208, %v342
      %344 = vmatmul.bf16.gmra.mxu0 %v248
      %v345 = vpop.f32.mrf.mxu0
      %v346 = vadd.f32 %v208, %v345
      %v347 = vpop.f32.mrf.mxu0
      %v348 = vadd.f32 %v208, %v347
      %349 = vmatmul.bf16.gmra.mxu0 %v249
      %v350 = vpop.f32.mrf.mxu0
      %v351 = vadd.f32 %v208, %v350
      %v352 = vpop.f32.mrf.mxu0
      %v353 = vadd.f32 %v208, %v352
      %354 = vdwg.mxu0
      %355 = vmax.xlane.f32.xlu0 %v316
      %v356 = vpop.xlane.xlu0 %355
      %357 = vmax.xlane.f32.xlu0 %v318
      %v358 = vpop.xlane.xlu0 %357
      %359 = vmax.xlane.f32.xlu0 %v321
      %v360 = vpop.xlane.xlu0 %359
      %361 = vmax.xlane.f32.xlu0 %v323
      %v362 = vpop.xlane.xlu0 %361
      %363 = vmax.xlane.f32.xlu0 %v326
      %v364 = vpop.xlane.xlu0 %363
      %365 = vmax.xlane.f32.xlu0 %v328
      %v366 = vpop.xlane.xlu0 %365
      %367 = vmax.xlane.f32.xlu0 %v331
      %v368 = vpop.xlane.xlu0 %367
      %369 = vmax.xlane.f32.xlu0 %v333
      %v370 = vpop.xlane.xlu0 %369
      %371 = vmax.xlane.f32.xlu0 %v336
      %v372 = vpop.xlane.xlu0 %371
      %373 = vmax.xlane.f32.xlu0 %v338
      %v374 = vpop.xlane.xlu0 %373
      %375 = vmax.xlane.f32.xlu0 %v341
      %v376 = vpop.xlane.xlu0 %375
      %377 = vmax.xlane.f32.xlu0 %v343
      %v378 = vpop.xlane.xlu0 %377
      %379 = vmax.xlane.f32.xlu0 %v346
      %v380 = vpop.xlane.xlu0 %379
      %381 = vmax.xlane.f32.xlu0 %v348
      %v382 = vpop.xlane.xlu0 %381
      %383 = vmax.xlane.f32.xlu0 %v351
      %v384 = vpop.xlane.xlu0 %383
      %385 = vmax.xlane.f32.xlu0 %v353
      %v386 = vpop.xlane.xlu0 %385
      %v387 = vsub.f32 %v316, %v356
      %v388 = vsub.f32 %v318, %v358
      %v389 = vsub.f32 %v321, %v360
      %v390 = vsub.f32 %v323, %v362
      %v391 = vsub.f32 %v326, %v364
      %v392 = vsub.f32 %v328, %v366
      %v393 = vsub.f32 %v331, %v368
      %v394 = vsub.f32 %v333, %v370
      %v395 = vsub.f32 %v336, %v372
      %v396 = vsub.f32 %v338, %v374
      %v397 = vsub.f32 %v341, %v376
      %v398 = vsub.f32 %v343, %v378
      %v399 = vsub.f32 %v346, %v380
      %v400 = vsub.f32 %v348, %v382
      %v401 = vsub.f32 %v351, %v384
      %v402 = vsub.f32 %v353, %v386
      %v403 = vmul.f32 %v387, 1.442695
      %v404 = vpow.pop %v403
      %v405 = vmul.f32 %v388, 1.442695
      %v406 = vpow.pop %v405
      %v407 = vmul.f32 %v389, 1.442695
      %v408 = vpow.pop %v407
      %v409 = vmul.f32 %v390, 1.442695
      %v410 = vpow.pop %v409
      %v411 = vmul.f32 %v391, 1.442695
      %v412 = vpow.pop %v411
      %v413 = vmul.f32 %v392, 1.442695
      %v414 = vpow.pop %v413
      %v415 = vmul.f32 %v393, 1.442695
      %v416 = vpow.pop %v415
      %v417 = vmul.f32 %v394, 1.442695
      %v418 = vpow.pop %v417
      %v419 = vmul.f32 %v395, 1.442695
      %v420 = vpow.pop %v419
      %v421 = vmul.f32 %v396, 1.442695
      %v422 = vpow.pop %v421
      %v423 = vmul.f32 %v397, 1.442695
      %v424 = vpow.pop %v423
      %v425 = vmul.f32 %v398, 1.442695
      %v426 = vpow.pop %v425
      %v427 = vmul.f32 %v399, 1.442695
      %v428 = vpow.pop %v427
      %v429 = vmul.f32 %v400, 1.442695
      %v430 = vpow.pop %v429
      %v431 = vmul.f32 %v401, 1.442695
      %v432 = vpow.pop %v431
      %v433 = vmul.f32 %v402, 1.442695
      %v434 = vpow.pop %v433
      %435 = vadd.xlane.f32.xlu0 %v404
      %v436 = vpop.xlane.xlu0 %435
      %437 = vadd.xlane.f32.xlu0 %v406
      %v438 = vpop.xlane.xlu0 %437
      %439 = vadd.xlane.f32.xlu0 %v408
      %v440 = vpop.xlane.xlu0 %439
      %441 = vadd.xlane.f32.xlu0 %v410
      %v442 = vpop.xlane.xlu0 %441
      %443 = vadd.xlane.f32.xlu0 %v412
      %v444 = vpop.xlane.xlu0 %443
      %445 = vadd.xlane.f32.xlu0 %v414
      %v446 = vpop.xlane.xlu0 %445
      %447 = vadd.xlane.f32.xlu0 %v416
      %v448 = vpop.xlane.xlu0 %447
      %449 = vadd.xlane.f32.xlu0 %v418
      %v450 = vpop.xlane.xlu0 %449
      %451 = vadd.xlane.f32.xlu0 %v420
      %v452 = vpop.xlane.xlu0 %451
      %453 = vadd.xlane.f32.xlu0 %v422
      %v454 = vpop.xlane.xlu0 %453
      %455 = vadd.xlane.f32.xlu0 %v424
      %v456 = vpop.xlane.xlu0 %455
      %457 = vadd.xlane.f32.xlu0 %v426
      %v458 = vpop.xlane.xlu0 %457
      %459 = vadd.xlane.f32.xlu0 %v428
      %v460 = vpop.xlane.xlu0 %459
      %461 = vadd.xlane.f32.xlu0 %v430
      %v462 = vpop.xlane.xlu0 %461
      %463 = vadd.xlane.f32.xlu0 %v432
      %v464 = vpop.xlane.xlu0 %463
      %465 = vadd.xlane.f32.xlu0 %v434
      %v466 = vpop.xlane.xlu0 %465
      %v467 = vrcp.pop %v436
      %v468 = vmul.f32 %v436, %v467
      %v469 = vsub.f32 1.0, %v468
      %v470 = vmul.f32 %v467, %v469
      %v471 = vadd.f32 %v467, %v470
      %vm472 = vweird.f32 %v436
      %vm473 = vweird.f32 %v467
      %vm474 = vmor %vm472, %vm473
      %v475 = vsel %vm474, %v467, %v471
      %v476 = vand.u32 2147483647, %v436
      %vm477 = vcmp.eq.f32.partialorder %v476, 8.507059e+37
      %v478 = vand.u32 %v436, 2147483648
      %v479 = vor.u32 1.1754944e-38, %v478
      %v480 = vsel %vm477, %v479, %v475
      %v481 = vmul.f32 %v404, %v480
      %v482 = vrcp.pop %v438
      %v483 = vmul.f32 %v438, %v482
      %v484 = vsub.f32 1.0, %v483
      %v485 = vmul.f32 %v482, %v484
      %v486 = vadd.f32 %v482, %v485
      %vm487 = vweird.f32 %v438
      %vm488 = vweird.f32 %v482
      %vm489 = vmor %vm487, %vm488
      %v490 = vsel %vm489, %v482, %v486
      %v491 = vand.u32 2147483647, %v438
      %vm492 = vcmp.eq.f32.partialorder %v491, 8.507059e+37
      %v493 = vand.u32 %v438, 2147483648
      %v494 = vor.u32 1.1754944e-38, %v493
      %v495 = vsel %vm492, %v494, %v490
      %v496 = vmul.f32 %v406, %v495
      %v497 = vrcp.pop %v440
      %v498 = vmul.f32 %v440, %v497
      %v499 = vsub.f32 1.0, %v498
      %v500 = vmul.f32 %v497, %v499
      %v501 = vadd.f32 %v497, %v500
      %vm502 = vweird.f32 %v440
      %vm503 = vweird.f32 %v497
      %vm504 = vmor %vm502, %vm503
      %v505 = vsel %vm504, %v497, %v501
      %v506 = vand.u32 2147483647, %v440
      %vm507 = vcmp.eq.f32.partialorder %v506, 8.507059e+37
      %v508 = vand.u32 %v440, 2147483648
      %v509 = vor.u32 1.1754944e-38, %v508
      %v510 = vsel %vm507, %v509, %v505
      %v511 = vmul.f32 %v408, %v510
      %v512 = vrcp.pop %v442
      %v513 = vmul.f32 %v442, %v512
      %v514 = vsub.f32 1.0, %v513
      %v515 = vmul.f32 %v512, %v514
      %v516 = vadd.f32 %v512, %v515
      %vm517 = vweird.f32 %v442
      %vm518 = vweird.f32 %v512
      %vm519 = vmor %vm517, %vm518
      %v520 = vsel %vm519, %v512, %v516
      %v521 = vand.u32 2147483647, %v442
      %vm522 = vcmp.eq.f32.partialorder %v521, 8.507059e+37
      %v523 = vand.u32 %v442, 2147483648
      %v524 = vor.u32 1.1754944e-38, %v523
      %v525 = vsel %vm522, %v524, %v520
      %v526 = vmul.f32 %v410, %v525
      %v527 = vrcp.pop %v444
      %v528 = vmul.f32 %v444, %v527
      %v529 = vsub.f32 1.0, %v528
      %v530 = vmul.f32 %v527, %v529
      %v531 = vadd.f32 %v527, %v530
      %vm532 = vweird.f32 %v444
      %vm533 = vweird.f32 %v527
      %vm534 = vmor %vm532, %vm533
      %v535 = vsel %vm534, %v527, %v531
      %v536 = vand.u32 2147483647, %v444
      %vm537 = vcmp.eq.f32.partialorder %v536, 8.507059e+37
      %v538 = vand.u32 %v444, 2147483648
      %v539 = vor.u32 1.1754944e-38, %v538
      %v540 = vsel %vm537, %v539, %v535
      %v541 = vmul.f32 %v412, %v540
      %v542 = vrcp.pop %v446
      %v543 = vmul.f32 %v446, %v542
      %v544 = vsub.f32 1.0, %v543
      %v545 = vmul.f32 %v542, %v544
      %v546 = vadd.f32 %v542, %v545
      %vm547 = vweird.f32 %v446
      %vm548 = vweird.f32 %v542
      %vm549 = vmor %vm547, %vm548
      %v550 = vsel %vm549, %v542, %v546
      %v551 = vand.u32 2147483647, %v446
      %vm552 = vcmp.eq.f32.partialorder %v551, 8.507059e+37
      %v553 = vand.u32 %v446, 2147483648
      %v554 = vor.u32 1.1754944e-38, %v553
      %v555 = vsel %vm552, %v554, %v550
      %v556 = vmul.f32 %v414, %v555
      %v557 = vrcp.pop %v448
      %v558 = vmul.f32 %v448, %v557
      %v559 = vsub.f32 1.0, %v558
      %v560 = vmul.f32 %v557, %v559
      %v561 = vadd.f32 %v557, %v560
      %vm562 = vweird.f32 %v448
      %vm563 = vweird.f32 %v557
      %vm564 = vmor %vm562, %vm563
      %v565 = vsel %vm564, %v557, %v561
      %v566 = vand.u32 2147483647, %v448
      %vm567 = vcmp.eq.f32.partialorder %v566, 8.507059e+37
      %v568 = vand.u32 %v448, 2147483648
      %v569 = vor.u32 1.1754944e-38, %v568
      %v570 = vsel %vm567, %v569, %v565
      %v571 = vmul.f32 %v416, %v570
      %v572 = vrcp.pop %v450
      %v573 = vmul.f32 %v450, %v572
      %v574 = vsub.f32 1.0, %v573
      %v575 = vmul.f32 %v572, %v574
      %v576 = vadd.f32 %v572, %v575
      %vm577 = vweird.f32 %v450
      %vm578 = vweird.f32 %v572
      %vm579 = vmor %vm577, %vm578
      %v580 = vsel %vm579, %v572, %v576
      %v581 = vand.u32 2147483647, %v450
      %vm582 = vcmp.eq.f32.partialorder %v581, 8.507059e+37
      %v583 = vand.u32 %v450, 2147483648
      %v584 = vor.u32 1.1754944e-38, %v583
      %v585 = vsel %vm582, %v584, %v580
      %v586 = vmul.f32 %v418, %v585
      %v587 = vrcp.pop %v452
      %v588 = vmul.f32 %v452, %v587
      %v589 = vsub.f32 1.0, %v588
      %v590 = vmul.f32 %v587, %v589
      %v591 = vadd.f32 %v587, %v590
      %vm592 = vweird.f32 %v452
      %vm593 = vweird.f32 %v587
      %vm594 = vmor %vm592, %vm593
      %v595 = vsel %vm594, %v587, %v591
      %v596 = vand.u32 2147483647, %v452
      %vm597 = vcmp.eq.f32.partialorder %v596, 8.507059e+37
      %v598 = vand.u32 %v452, 2147483648
      %v599 = vor.u32 1.1754944e-38, %v598
      %v600 = vsel %vm597, %v599, %v595
      %v601 = vmul.f32 %v420, %v600
      %v602 = vrcp.pop %v454
      %v603 = vmul.f32 %v454, %v602
      %v604 = vsub.f32 1.0, %v603
      %v605 = vmul.f32 %v602, %v604
      %v606 = vadd.f32 %v602, %v605
      %vm607 = vweird.f32 %v454
      %vm608 = vweird.f32 %v602
      %vm609 = vmor %vm607, %vm608
      %v610 = vsel %vm609, %v602, %v606
      %v611 = vand.u32 2147483647, %v454
      %vm612 = vcmp.eq.f32.partialorder %v611, 8.507059e+37
      %v613 = vand.u32 %v454, 2147483648
      %v614 = vor.u32 1.1754944e-38, %v613
      %v615 = vsel %vm612, %v614, %v610
      %v616 = vmul.f32 %v422, %v615
      %v617 = vrcp.pop %v456
      %v618 = vmul.f32 %v456, %v617
      %v619 = vsub.f32 1.0, %v618
      %v620 = vmul.f32 %v617, %v619
      %v621 = vadd.f32 %v617, %v620
      %vm622 = vweird.f32 %v456
      %vm623 = vweird.f32 %v617
      %vm624 = vmor %vm622, %vm623
      %v625 = vsel %vm624, %v617, %v621
      %v626 = vand.u32 2147483647, %v456
      %vm627 = vcmp.eq.f32.partialorder %v626, 8.507059e+37
      %v628 = vand.u32 %v456, 2147483648
      %v629 = vor.u32 1.1754944e-38, %v628
      %v630 = vsel %vm627, %v629, %v625
      %v631 = vmul.f32 %v424, %v630
      %v632 = vrcp.pop %v458
      %v633 = vmul.f32 %v458, %v632
      %v634 = vsub.f32 1.0, %v633
      %v635 = vmul.f32 %v632, %v634
      %v636 = vadd.f32 %v632, %v635
      %vm637 = vweird.f32 %v458
      %vm638 = vweird.f32 %v632
      %vm639 = vmor %vm637, %vm638
      %v640 = vsel %vm639, %v632, %v636
      %v641 = vand.u32 2147483647, %v458
      %vm642 = vcmp.eq.f32.partialorder %v641, 8.507059e+37
      %v643 = vand.u32 %v458, 2147483648
      %v644 = vor.u32 1.1754944e-38, %v643
      %v645 = vsel %vm642, %v644, %v640
      %v646 = vmul.f32 %v426, %v645
      %v647 = vrcp.pop %v460
      %v648 = vmul.f32 %v460, %v647
      %v649 = vsub.f32 1.0, %v648
      %v650 = vmul.f32 %v647, %v649
      %v651 = vadd.f32 %v647, %v650
      %vm652 = vweird.f32 %v460
      %vm653 = vweird.f32 %v647
      %vm654 = vmor %vm652, %vm653
      %v655 = vsel %vm654, %v647, %v651
      %v656 = vand.u32 2147483647, %v460
      %vm657 = vcmp.eq.f32.partialorder %v656, 8.507059e+37
      %v658 = vand.u32 %v460, 2147483648
      %v659 = vor.u32 1.1754944e-38, %v658
      %v660 = vsel %vm657, %v659, %v655
      %v661 = vmul.f32 %v428, %v660
      %v662 = vrcp.pop %v462
      %v663 = vmul.f32 %v462, %v662
      %v664 = vsub.f32 1.0, %v663
      %v665 = vmul.f32 %v662, %v664
      %v666 = vadd.f32 %v662, %v665
      %vm667 = vweird.f32 %v462
      %vm668 = vweird.f32 %v662
      %vm669 = vmor %vm667, %vm668
      %v670 = vsel %vm669, %v662, %v666
      %v671 = vand.u32 2147483647, %v462
      %vm672 = vcmp.eq.f32.partialorder %v671, 8.507059e+37
      %v673 = vand.u32 %v462, 2147483648
      %v674 = vor.u32 1.1754944e-38, %v673
      %v675 = vsel %vm672, %v674, %v670
      %v676 = vmul.f32 %v430, %v675
      %v677 = vrcp.pop %v464
      %v678 = vmul.f32 %v464, %v677
      %v679 = vsub.f32 1.0, %v678
      %v680 = vmul.f32 %v677, %v679
      %v681 = vadd.f32 %v677, %v680
      %vm682 = vweird.f32 %v464
      %vm683 = vweird.f32 %v677
      %vm684 = vmor %vm682, %vm683
      %v685 = vsel %vm684, %v677, %v681
      %v686 = vand.u32 2147483647, %v464
      %vm687 = vcmp.eq.f32.partialorder %v686, 8.507059e+37
      %v688 = vand.u32 %v464, 2147483648
      %v689 = vor.u32 1.1754944e-38, %v688
      %v690 = vsel %vm687, %v689, %v685
      %v691 = vmul.f32 %v432, %v690
      %v692 = vrcp.pop %v466
      %v693 = vmul.f32 %v466, %v692
      %v694 = vsub.f32 1.0, %v693
      %v695 = vmul.f32 %v692, %v694
      %v696 = vadd.f32 %v692, %v695
      %vm697 = vweird.f32 %v466
      %vm698 = vweird.f32 %v692
      %vm699 = vmor %vm697, %vm698
      %v700 = vsel %vm699, %v692, %v696
      %v701 = vand.u32 2147483647, %v466
      %vm702 = vcmp.eq.f32.partialorder %v701, 8.507059e+37
      %v703 = vand.u32 %v466, 2147483648
      %v704 = vor.u32 1.1754944e-38, %v703
      %v705 = vsel %vm702, %v704, %v700
      %v706 = vmul.f32 %v434, %v705
      %707 = vst [vmem:[%s172] sm:$0xff] %v481
      %708 = vst [vmem:[%s172 + $0x8] sm:$0xff] %v496
      %709 = vst [vmem:[%s172 + $0x10] sm:$0xff] %v511
      %710 = vst [vmem:[%s172 + $0x18] sm:$0xff] %v526
      %711 = vst [vmem:[%s172 + $0x20] sm:$0xff] %v541
      %712 = vst [vmem:[%s172 + $0x28] sm:$0xff] %v556
      %713 = vst [vmem:[%s172 + $0x30] sm:$0xff] %v571
      %714 = vst [vmem:[%s172 + $0x38] sm:$0xff] %v586
      %715 = vst [vmem:[%s172 + $0x40] sm:$0xff] %v601
      %716 = vst [vmem:[%s172 + $0x48] sm:$0xff] %v616
      %717 = vst [vmem:[%s172 + $0x50] sm:$0xff] %v631
      %718 = vst [vmem:[%s172 + $0x58] sm:$0xff] %v646
      %719 = vst [vmem:[%s172 + $0x60] sm:$0xff] %v661
      %720 = vst [vmem:[%s172 + $0x68] sm:$0xff] %v676
      %721 = vst [vmem:[%s172 + $0x70] sm:$0xff] %v691
      %722 = vst [vmem:[%s172 + $0x78] sm:$0xff] %v706
      %s723 = smul.u32 16, %s14
      %p724 = scmp.lt.s32.totalorder %s723, 31
      %s725 = scalar_select %p724, %s723, 31
      %s726 = smul.addr %s725, 8
      %s727 = scalar_lea.vmem %s3, %s726
      // Predicated region
      $region33: #{temp_scaled_forward.1} parent=31 // pred_check
        %p728 = pneg %p100
      $region34: #{temp_scaled_forward.1} parent=31 // pred_check_branch
        %730 = sbr.rel (%p728) target = $region36
      $region35: #{temp_scaled_forward.1} parent=31 // pred_region
        %s731 = smul.u32 16, %s14
      $region36: #{temp_scaled_forward.1} parent=31 // pred_fallthru
        _
    $region32: #{temp_scaled_forward.1} parent=5 // pred_fallthru
      _
    %p732 = scmp.le.s32.totalorder 2, %s9
    // Predicated region
    $region37: #{temp_scaled_forward.1} parent=5 // pred_check
      %p733 = pneg %p732
    $region38: #{temp_scaled_forward.1} parent=5 // pred_check_branch
      %735 = sbr.rel (%p733) target = $region40
    $region39: #{temp_scaled_forward.1} parent=5 // pred_region
      %s736 = ssub.s32 %s9, 2
      // Predicated region
      $region41: #{temp_scaled_forward.1} parent=39 // pred_check
        %p737 = pneg %p106
      $region42: #{temp_scaled_forward.1} parent=39 // pred_check_branch
        %739 = sbr.rel (%p737) target = $region44
      $region43: #{temp_scaled_forward.1} parent=39 // pred_region
        %s740 = smul.u32 16, %s15
        %p741 = scmp.lt.s32.totalorder %s740, 31
        %s742 = scalar_select %p741, %s740, 31
        %s743 = smul.addr %s742, 8
        %s744 = scalar_lea.vmem %s3, %s743
      $region44: #{temp_scaled_forward.1} parent=39 // pred_fallthru
        _
    $region40: #{temp_scaled_forward.1} parent=5 // pred_fallthru
      _
  $region6: #{temp_scaled_forward.1} parent=0 // loop_footer
    %s13 = sadd.s32 1, %s9
  $region7: #{temp_scaled_forward.1} parent=0 // loop_footer_branch
    %8 = sbr.rel target = $region3
  $region8: #{temp_scaled_forward.1} parent=0 // loop_exit
    _

</llo_original>
